<compile_context>
chip_gen: v5e
topology: v5e:2x2
jax: 0.10.0
libtpu: 0.0.40
codegen_flags: <defaults>
</compile_context>

<pallas_src>
from functools import partial

import jax
import jax.numpy as jnp
from jax import lax
from jax.experimental import pallas as pl
from jax.experimental.pallas import tpu as pltpu


# --------------------------------------------------------------------------
# Fused FiLM kernel: projection + per-row coefficient build + broadcast-FMA
# --------------------------------------------------------------------------
def _film_kernel(cond_ref, w_ref, b_ref, x_ref, o_ref, *, rows, n_batch, n_ch):
    f32 = jnp.float32
    two_c = 2 * n_ch

    # ---- tiny conditioning projection: SiLU + Linear (PyTorch weight layout) ----
    # TODO(synk): for very large N*n_emb, cache this per r-block in VMEM scratch
    # (recompute at h==0 with the h axis "arbitrary") instead of per-step recompute.
    cond = cond_ref[...].astype(f32)                       # (N, n_emb)
    emb = cond * jax.nn.sigmoid(cond)                      # SiLU (EUP)
    proj = lax.dot_general(                                # emb @ W.T -> (N, 2C)
        emb, w_ref[...].astype(f32),
        dimension_numbers=(((1,), (1,)), ((), ())),
        preferred_element_type=f32)
    proj = proj + b_ref[...].astype(f32)                   # + bias

    # ---- per-flat-row (n*C + c) FiLM coefficients for this ROWS block -----------
    row0 = pl.program_id(0) * rows
    rid = row0 + lax.broadcasted_iota(jnp.int32, (rows, n_batch), 0)   # flat row id
    nid = lax.broadcasted_iota(jnp.int32, (rows, n_batch), 1)          # batch id
    sel = jnp.logical_and(rid >= nid * n_ch, rid < (nid + 1) * n_ch)   # one-hot row->batch
    sel = sel.astype(f32)                                              # (ROWS, N)

    n_col = jnp.sum(sel * nid.astype(f32), axis=1, keepdims=True)      # (ROWS, 1) batch idx
    r_col = (row0 + lax.broadcasted_iota(jnp.int32, (rows, 1), 0)).astype(f32)
    c_col = r_col - n_col * float(n_ch)                                # (ROWS, 1) channel idx

    gath = jnp.dot(sel, proj, preferred_element_type=f32)              # (ROWS, 2C) = proj[n_i, :]
    j_col = lax.broadcasted_iota(jnp.int32, (rows, two_c), 1).astype(f32)
    scale1p = jnp.sum(jnp.where(j_col == c_col, gath, 0.0),
                      axis=1, keepdims=True) + 1.0                     # 1 + scale (ROWS, 1)
    shift = jnp.sum(jnp.where(j_col == c_col + float(n_ch), gath, 0.0),
                    axis=1, keepdims=True)                             # shift     (ROWS, 1)

    # ---- HBM-bound broadcast-FMA (f32 math; safe on v5e's no-bf16 VPU) ----------
    x = x_ref[...].astype(f32)                                         # (ROWS, HW_TILE)
    o_ref[...] = (x * scale1p + shift).astype(o_ref.dtype)


# --------------------------------------------------------------------------
# Tile selection: VMEM-budgeted, lane-dense, >=2 grid steps when worth it
# --------------------------------------------------------------------------
_BLOCK_BUDGET_BYTES = 2 << 20  # per x block; ~4x (x + out, double-buffered) <= 8 MiB


def _pick_mod_tiles(nc, hw, itemsize):
    hw_cands = [h for h in (16384, 8192, 4096, 2048, 1024, 512, 256, 128)
                if h <= hw and hw % h == 0]
    if not hw_cands:
        # TODO(synk): H*W not a multiple of 128 -> output stores become masked vst
        # (perf only; correctness is preserved via the full-extent block exception).
        hw_cands = [hw]
    row_cands = [r for r in (1024, 512, 256, 128, 64, 32, 16, 8)
                 if r <= nc and nc % r == 0]
    if not row_cands:
        row_cands = [nc]

    best = None
    for h in hw_cands:                       # prefer lane-dense, long contiguous DMAs
        for r in row_cands:
            if r * h * itemsize <= _BLOCK_BUDGET_BYTES:
                key = (r * h, h)
                if best is None or key > best[0]:
                    best = (key, r, h)
    if best is None:
        r, h = row_cands[-1], hw_cands[-1]   # smallest legal block (awkward shapes)
    else:
        _, r, h = best

    # v7x megacore: guarantee >=2 grid steps when the tensor is big enough to care.
    if (nc // r) * (hw // h) == 1 and nc * hw * itemsize >= (512 << 10):
        smaller_r = [c for c in row_cands if c < r]
        smaller_h = [c for c in hw_cands if c < h]
        if smaller_r:
            r = smaller_r[0]
        elif smaller_h:
            h = smaller_h[0]

    block_bytes = r * h * itemsize
    vmem_limit = None
    if 4 * block_bytes > (12 << 20):         # only the awkward-shape fallback gets here
        vmem_limit = int(4 * block_bytes + (4 << 20))
    return r, h, vmem_limit


# --------------------------------------------------------------------------
# Wrapper
# --------------------------------------------------------------------------
def film_block(x, cond_embed, w, b):
    """x: (N, C, H, W) NCHW; cond_embed: (N, n_emb); w: (2*C, n_emb); b: (2*C,)."""
    n, c, h, wd = x.shape
    n_emb = cond_embed.shape[1]
    assert w.shape == (2 * c, n_emb) and b.shape == (2 * c,)

    nc, hw = n * c, h * wd
    x_flat = x.reshape(nc, hw)               # row-major bitcast: free
    b2d = b.reshape(1, 2 * c)

    rows, hw_tile, vmem_limit = _pick_mod_tiles(nc, hw, x.dtype.itemsize)
    grid = (nc // rows, hw // hw_tile)

    cp_kwargs = dict(dimension_semantics=("parallel", "parallel"))
    if vmem_limit is not None:
        cp_kwargs["vmem_limit_bytes"] = vmem_limit

    out_flat = pl.pallas_call(
        partial(_film_kernel, rows=rows, n_batch=n, n_ch=c),
        out_shape=jax.ShapeDtypeStruct((nc, hw), x.dtype),
        grid=grid,
        in_specs=[
            pl.BlockSpec((n, n_emb), lambda r, hh: (0, 0)),       # cond (resident)
            pl.BlockSpec((2 * c, n_emb), lambda r, hh: (0, 0)),   # W    (resident)
            pl.BlockSpec((1, 2 * c), lambda r, hh: (0, 0)),       # b    (resident)
            pl.BlockSpec((rows, hw_tile), lambda r, hh: (r, hh)),  # x tile
        ],
        out_specs=pl.BlockSpec((rows, hw_tile), lambda r, hh: (r, hh)),
        compiler_params=pltpu.CompilerParams(**cp_kwargs),
    )(cond_embed, w, b2d, x_flat)

    return out_flat.reshape(n, c, h, wd)


def film_block_ref(x, cond_embed, w, b):
    """Pure-JAX reference matching the PyTorch module semantics."""
    emb = cond_embed * jax.nn.sigmoid(cond_embed)          # SiLU
    emb = emb @ w.T + b                                    # (N, 2*ni)
    ni = x.shape[1]
    scale = emb[:, :ni][:, :, None, None]
    shift = emb[:, ni:][:, :, None, None]
    return x * (1.0 + scale) + shift


if __name__ == "__main__":
    N, C, H, Wd = 2, 4, 16, 16
    n_emb = 32

    key = jax.random.PRNGKey(0)
    kx, kc, kw, kb = jax.random.split(key, 4)

    x = jax.random.normal(kx, (N, C, H, Wd), dtype=jnp.float32)
    cond = jax.random.normal(kc, (N, n_emb), dtype=jnp.float32)
    # nn.Linear(n_emb, 2*C): W (2*C, n_emb), b (2*C,)
    W = jax.random.normal(kw, (2 * C, n_emb), dtype=jnp.float32) * 0.1
    b = jax.random.normal(kb, (2 * C,), dtype=jnp.float32) * 0.1

    out = jax.block_until_ready(jax.jit(film_block)(x, cond, W, b))
    ref = film_block_ref(x, cond, W, b)

    assert out.shape == (N, C, H, Wd)
    # Tolerance allows for MXU multi-pass (bf16-based) rounding of the f32
    # projection matmuls on some TPU generations; structural errors are O(0.1+).
    assert jnp.allclose(out, ref, atol=2e-2, rtol=2e-2), "mismatch vs reference"

    print("KERNEL_OK")
</pallas_src>

<mosaic_0001>
module attributes {stable_mosaic.version = 11 : i64} {
  func.func @_film_kernel(%arg0: i32, %arg1: i32, %arg2: memref<2x32xf32, #tpu.memory_space<vmem>>, %arg3: memref<8x32xf32, #tpu.memory_space<vmem>>, %arg4: memref<1x8xf32, #tpu.memory_space<vmem>>, %arg5: memref<8x256xf32, #tpu.memory_space<vmem>>, %arg6: memref<8x256xf32, #tpu.memory_space<vmem>>) attributes {dimension_semantics = [#tpu.dimension_semantics<parallel>, #tpu.dimension_semantics<parallel>], iteration_bounds = array<i64: 1, 1>, scalar_prefetch = 0 : i64, scratch_operands = 0 : i64, tpu.core_type = #tpu.core_type<tc>, window_params = [{pipeline_mode = #tpu.pipeline_mode<synchronous>, transform_indices = @transform_0, window_bounds = array<i64: 2, 32>}, {pipeline_mode = #tpu.pipeline_mode<synchronous>, transform_indices = @transform_1, window_bounds = array<i64: 8, 32>}, {pipeline_mode = #tpu.pipeline_mode<synchronous>, transform_indices = @transform_2, window_bounds = array<i64: 1, 8>}, {transform_indices = @transform_3, window_bounds = array<i64: 8, 256>}, {transform_indices = @transform_4, window_bounds = array<i64: 8, 256>}]} {
    %c0 = arith.constant 0 : index
    %c0_0 = arith.constant 0 : index
    %0 = vector.load %arg2[%c0, %c0_0] : memref<2x32xf32, #tpu.memory_space<vmem>>, vector<2x32xf32>
    %1 = arith.negf %0 : vector<2x32xf32>
    %2 = math.exp %1 : vector<2x32xf32>
    %cst = arith.constant 1.000000e+00 : f32
    %3 = vector.broadcast %cst : f32 to vector<2x32xf32>
    %4 = arith.addf %3, %2 : vector<2x32xf32>
    %5 = arith.divf %3, %4 : vector<2x32xf32>
    %6 = arith.mulf %0, %5 : vector<2x32xf32>
    %c0_1 = arith.constant 0 : index
    %c0_2 = arith.constant 0 : index
    %7 = vector.load %arg3[%c0_1, %c0_2] : memref<8x32xf32, #tpu.memory_space<vmem>>, vector<8x32xf32>
    %cst_3 = arith.constant dense<0.000000e+00> : vector<2x8xf32>
    %8 = tpu.matmul %6, %7, %cst_3 {dimension_numbers = #tpu.dot_dimension_numbers<[1], [1], [0], [0], [0, 0, 1, 0], [], []>} : vector<2x32xf32>, vector<8x32xf32>, vector<2x8xf32> -> vector<2x8xf32>
    %c0_4 = arith.constant 0 : index
    %c0_5 = arith.constant 0 : index
    %9 = vector.load %arg4[%c0_4, %c0_5] : memref<1x8xf32, #tpu.memory_space<vmem>>, vector<1x8xf32>
    %10 = vector.broadcast %9 : vector<1x8xf32> to vector<2x8xf32>
    %11 = arith.addf %8, %10 : vector<2x8xf32>
    %c8_i32 = arith.constant 8 : i32
    %12 = arith.muli %arg0, %c8_i32 : i32
    %13 = tpu.iota {dimensions = array<i32: 0>} : vector<8x2xi32>
    %14 = vector.broadcast %12 : i32 to vector<8x2xi32>
    %15 = arith.addi %14, %13 : vector<8x2xi32>
    %16 = tpu.iota {dimensions = array<i32: 1>} : vector<8x2xi32>
    %c4_i32 = arith.constant 4 : i32
    %17 = vector.broadcast %c4_i32 : i32 to vector<8x2xi32>
    %18 = arith.muli %16, %17 : vector<8x2xi32>
    %19 = arith.cmpi sge, %15, %18 : vector<8x2xi32>
    %c1_i32 = arith.constant 1 : i32
    %20 = vector.broadcast %c1_i32 : i32 to vector<8x2xi32>
    %21 = arith.addi %16, %20 : vector<8x2xi32>
    %c4_i32_6 = arith.constant 4 : i32
    %22 = vector.broadcast %c4_i32_6 : i32 to vector<8x2xi32>
    %23 = arith.muli %21, %22 : vector<8x2xi32>
    %24 = arith.cmpi slt, %15, %23 : vector<8x2xi32>
    %25 = arith.andi %19, %24 : vector<8x2xi1>
    %26 = arith.extui %25 : vector<8x2xi1> to vector<8x2xi32>
    %27 = arith.sitofp %26 : vector<8x2xi32> to vector<8x2xf32>
    %28 = arith.sitofp %16 : vector<8x2xi32> to vector<8x2xf32>
    %29 = arith.mulf %27, %28 : vector<8x2xf32>
    %cst_7 = arith.constant dense<0.000000e+00> : vector<8xf32>
    %30 = vector.multi_reduction <add>, %29, %cst_7 [1] : vector<8x2xf32> to vector<8xf32>
    %31 = vector.shape_cast %30 : vector<8xf32> to vector<8x1xf32>
    %32 = tpu.iota {dimensions = array<i32: 0>} : vector<8x1xi32>
    %33 = vector.broadcast %12 : i32 to vector<8x1xi32>
    %34 = arith.addi %33, %32 : vector<8x1xi32>
    %35 = arith.sitofp %34 : vector<8x1xi32> to vector<8x1xf32>
    %cst_8 = arith.constant 4.000000e+00 : f32
    %36 = vector.broadcast %cst_8 : f32 to vector<8x1xf32>
    %37 = arith.mulf %31, %36 : vector<8x1xf32>
    %38 = arith.subf %35, %37 : vector<8x1xf32>
    %cst_9 = arith.constant dense<0.000000e+00> : vector<8x8xf32>
    %39 = tpu.matmul %27, %11, %cst_9 {dimension_numbers = #tpu.dot_dimension_numbers<[1], [0], [0], [1], [0, 0, 1, 1], [], []>} : vector<8x2xf32>, vector<2x8xf32>, vector<8x8xf32> -> vector<8x8xf32>
    %40 = tpu.iota {dimensions = array<i32: 1>} : vector<8x8xi32>
    %41 = arith.sitofp %40 : vector<8x8xi32> to vector<8x8xf32>
    %42 = vector.broadcast %38 : vector<8x1xf32> to vector<8x8xf32>
    %43 = arith.cmpf oeq, %41, %42 : vector<8x8xf32>
    %cst_10 = arith.constant 0.000000e+00 : f32
    %44 = vector.broadcast %cst_10 : f32 to vector<8x8xf32>
    %45 = arith.select %43, %39, %44 : vector<8x8xi1>, vector<8x8xf32>
    %cst_11 = arith.constant dense<0.000000e+00> : vector<8xf32>
    %46 = vector.multi_reduction <add>, %45, %cst_11 [1] : vector<8x8xf32> to vector<8xf32>
    %47 = vector.shape_cast %46 : vector<8xf32> to vector<8x1xf32>
    %cst_12 = arith.constant 1.000000e+00 : f32
    %48 = vector.broadcast %cst_12 : f32 to vector<8x1xf32>
    %49 = arith.addf %47, %48 : vector<8x1xf32>
    %cst_13 = arith.constant 4.000000e+00 : f32
    %50 = vector.broadcast %cst_13 : f32 to vector<8x1xf32>
    %51 = arith.addf %38, %50 : vector<8x1xf32>
    %52 = vector.broadcast %51 : vector<8x1xf32> to vector<8x8xf32>
    %53 = arith.cmpf oeq, %41, %52 : vector<8x8xf32>
    %cst_14 = arith.constant 0.000000e+00 : f32
    %54 = vector.broadcast %cst_14 : f32 to vector<8x8xf32>
    %55 = arith.select %53, %39, %54 : vector<8x8xi1>, vector<8x8xf32>
    %cst_15 = arith.constant dense<0.000000e+00> : vector<8xf32>
    %56 = vector.multi_reduction <add>, %55, %cst_15 [1] : vector<8x8xf32> to vector<8xf32>
    %57 = vector.shape_cast %56 : vector<8xf32> to vector<8x1xf32>
    %c0_16 = arith.constant 0 : index
    %c0_17 = arith.constant 0 : index
    %58 = vector.load %arg5[%c0_16, %c0_17] : memref<8x256xf32, #tpu.memory_space<vmem>>, vector<8x256xf32>
    %59 = vector.broadcast %49 : vector<8x1xf32> to vector<8x256xf32>
    %60 = arith.mulf %58, %59 : vector<8x256xf32>
    %61 = vector.broadcast %57 : vector<8x1xf32> to vector<8x256xf32>
    %62 = arith.addf %60, %61 : vector<8x256xf32>
    %c0_18 = arith.constant 0 : index
    %c0_19 = arith.constant 0 : index
    %63 = vector.load %arg6[%c0_18, %c0_19] : memref<8x256xf32, #tpu.memory_space<vmem>>, vector<8x256xf32>
    tpu.vector_store %arg6[%c0_18, %c0_19], %62 {strides = array<i32>} : memref<8x256xf32, #tpu.memory_space<vmem>>, vector<8x256xf32>,
    return
  }
  func.func @transform_0(%arg0: i32, %arg1: i32) -> (i32, i32) {
    %c0_i32 = arith.constant 0 : i32
    %c0_i32_0 = arith.constant 0 : i32
    %c0_i32_1 = arith.constant 0 : i32
    return %c0_i32, %c0_i32_0 : i32, i32
  }
  func.func @transform_1(%arg0: i32, %arg1: i32) -> (i32, i32) {
    %c0_i32 = arith.constant 0 : i32
    %c0_i32_0 = arith.constant 0 : i32
    %c0_i32_1 = arith.constant 0 : i32
    return %c0_i32, %c0_i32_0 : i32, i32
  }
  func.func @transform_2(%arg0: i32, %arg1: i32) -> (i32, i32) {
    %c0_i32 = arith.constant 0 : i32
    %c0_i32_0 = arith.constant 0 : i32
    %c0_i32_1 = arith.constant 0 : i32
    return %c0_i32, %c0_i32_0 : i32, i32
  }
  func.func @transform_3(%arg0: i32, %arg1: i32) -> (i32, i32) {
    %c0_i32 = arith.constant 0 : i32
    return %arg0, %arg1 : i32, i32
  }
  func.func @transform_4(%arg0: i32, %arg1: i32) -> (i32, i32) {
    %c0_i32 = arith.constant 0 : i32
    return %arg0, %arg1 : i32, i32
  }
}

</mosaic_0001>

<llo_original>
// kernel: film_block.1
$region0: #{film_block.1}
  #allocation0 [shape = 'u32[]', space=smem, size = 0x4, offset = 0x4, fixed_abs, tag = 'smem constant byte address 0x4 - core index']
  #allocation1 [shape = 'u32[72,128]{1,0:T(1,128)}', space=vmem, size = 0x9000, scoped, tag = 'internal scratch']
  %s0 = inlined_call_operand.vmem [shape: f32[2,32], index: 0, kind: input, shape index: {}]
  %s1 = inlined_call_operand.vmem [shape: f32[8,32], index: 1, kind: input, shape index: {}]
  %s2 = inlined_call_operand.vmem [shape: f32[1,8], index: 2, kind: input, shape index: {}]
  %s3 = inlined_call_operand.vmem [shape: f32[8,256], index: 3, kind: input, shape index: {}]
  %s4 = inlined_call_operand.vmem [shape: f32[8,256], index: 4, kind: output, shape index: {}]
  %s5 = sld [smem:[#allocation0]]
  $region26: #{film_block.1} parent=0
    _
  %s7 = ssub.s32 1, %s5
  %s8 = scalar_select 0, %s7, %s5
  // Predicated region
  $region2: #{film_block.1} parent=0 // pred_check
    _
  $region3: #{film_block.1} parent=0 // pred_check_branch
    %10 = sbr.rel (0) target = $region5
  $region4: #{film_block.1} parent=0 // pred_region
    _
  $region5: #{film_block.1} parent=0 // pred_fallthru
    _
  // Predicated region
  $region6: #{film_block.1} parent=0 // pred_check
    _
  $region7: #{film_block.1} parent=0 // pred_check_branch
    %12 = sbr.rel (0) target = $region9
  $region8: #{film_block.1} parent=0 // pred_region
    _
  $region9: #{film_block.1} parent=0 // pred_fallthru
    _
  // Predicated region
  $region10: #{film_block.1} parent=0 // pred_check
    _
  $region11: #{film_block.1} parent=0 // pred_check_branch
    %14 = sbr.rel (0) target = $region13
  $region12: #{film_block.1} parent=0 // pred_region
    _
  $region13: #{film_block.1} parent=0 // pred_fallthru
    _
  // Predicated region
  $region14: #{film_block.1} parent=0 // pred_check
    _
  $region15: #{film_block.1} parent=0 // pred_check_branch
    %16 = sbr.rel (0) target = $region17
  $region16: #{film_block.1} parent=0 // pred_region
    _
  $region17: #{film_block.1} parent=0 // pred_fallthru
    _
  %v17 = vld [vmem:[%s0] sm:$0x3]
  %v18 = vxor.u32 %v17, 2147483648
  %v19 = vmul.f32 %v18, 1.442695
  %v20 = vpow.pop %v19
  %v21 = vadd.f32 %v20, 1.0
  %v22 = vrcp.pop %v21
  %v23 = vmul.f32 %v21, %v22
  %v24 = vsub.f32 1.0, %v23
  %v25 = vmul.f32 %v22, %v24
  %v26 = vadd.f32 %v22, %v25
  %vm27 = vweird.f32 %v21
  %vm28 = vweird.f32 %v22
  %vm29 = vmor %vm27, %vm28
  %v30 = vsel %vm29, %v22, %v26
  %v31 = vand.u32 2147483647, %v21
  %vm32 = vcmp.eq.f32.partialorder %v31, 8.507059e+37
  %v33 = vand.u32 %v21, 2147483648
  %v34 = vor.u32 1.1754944e-38, %v33
  %v35 = vsel %vm32, %v34, %v30
  %v36 = vmul.f32 1.0, %v35
  %v37 = vmul.f32 %v17, %v36
  %v38 = vld [vmem:[%s1] sm:$0xff]
  %v39 = vld [vmem:[%s2] sm:$0x1]
  %v41 = vperm.slane %v39, 0
  %vm43 = vcmask 261120
  %v45 = vsel %vm43, %v37, 0
  %v48 = vsel %vm43, %v38, 0
  %50 = vmatpush.xpose.msra.mxu0 0.0
  %51 = vmatpush.xpose.msra.mxu0 0.0
  %52 = vmatpush.xpose.msra.mxu0 0.0
  %53 = vmatpush.xpose.msra.mxu0 0.0
  %54 = vmatpush.xpose.msra.mxu0 0.0
  %55 = vmatpush.xpose.msra.mxu0 0.0
  %56 = vmatpush.xpose.msra.mxu0 0.0
  %57 = vmatpush.xpose.msra.mxu0 0.0
  %58 = vmatpush.xpose.msra.mxu0 0.0
  %59 = vmatpush.xpose.msra.mxu0 0.0
  %60 = vmatpush.xpose.msra.mxu0 0.0
  %61 = vmatpush.xpose.msra.mxu0 0.0
  %62 = vmatpush.xpose.msra.mxu0 0.0
  %63 = vmatpush.xpose.msra.mxu0 0.0
  %64 = vmatpush.xpose.msra.mxu0 0.0
  %65 = vmatpush.xpose.msra.mxu0 %v48
  %66 = vmatmul.f32.gmra.mxu0 %v45
  %v67 = vpop.f32.mrf.mxu0
  %v68 = vadd.f32 %v41, %v67
  %69 = vdwg.mxu0
  %s70 = smul.u32 0, 8
  %v71 = vlaneseq
  %v72 = vshrl.u32 %v71, 7
  %v73 = vstv %s70
  %v74 = vadd.s32 %v73, %v72
  %v75 = vlaneseq
  %v76 = vand.u32 %v75, 127
  %v77 = vmul.u32 %v76, 4
  %vm78 = vcmp.ge.s32.totalorder %v74, %v77
  %v79 = vadd.s32 %v76, 1
  %v80 = vmul.u32 %v79, 4
  %vm81 = vcmp.lt.s32.totalorder %v74, %v80
  %vm82 = vmand %vm78, %vm81
  %v83 = vsel %vm82, 1, 0
  %v84 = vcvt.s32.f32 %v83
  %v85 = vcvt.s32.f32 %v76
  %v86 = vmul.f32 %v84, %v85
  %vm87 = vcmask 15360
  %v88 = vsel %vm87, %v86, 0.0
  %89 = vadd.xlane.f32.xlu0 %v88
  %v90 = vpop.xlane.xlu0 %89
  %v91 = vcvt.s32.f32 %v74
  %v92 = vmul.f32 %v90, 4.0
  %v93 = vsub.f32 %v91, %v92
  %v95 = vsel %vm87, %v84, 0
  %vm97 = vcmask 1041408
  %v99 = vsel %vm97, %v68, 0
  %101 = vmatpush.msra.mxu0 0.0
  %102 = vmatpush.msra.mxu0 0.0
  %103 = vmatpush.msra.mxu0 0.0
  %104 = vmatpush.msra.mxu0 0.0
  %105 = vmatpush.msra.mxu0 0.0
  %106 = vmatpush.msra.mxu0 0.0
  %107 = vmatpush.msra.mxu0 0.0
  %108 = vmatpush.msra.mxu0 0.0
  %109 = vmatpush.msra.mxu0 0.0
  %110 = vmatpush.msra.mxu0 0.0
  %111 = vmatpush.msra.mxu0 0.0
  %112 = vmatpush.msra.mxu0 0.0
  %113 = vmatpush.msra.mxu0 0.0
  %114 = vmatpush.msra.mxu0 0.0
  %115 = vmatpush.msra.mxu0 0.0
  %116 = vmatpush.msra.mxu0 %v99
  %117 = vmatmul.f32.gmra.mxu0 %v95
  %v118 = vpop.f32.mrf.mxu0
  %v119 = vadd.f32 0.0, %v118
  %120 = vdwg.mxu0
  %vm121 = vcmp.eq.f32.partialorder %v85, %v93
  %v122 = vsel %vm121, %v119, 0.0
  %vm123 = vcmask 64512
  %v124 = vsel %vm123, %v122, 0.0
  %125 = vadd.xlane.f32.xlu0 %v124
  %v126 = vpop.xlane.xlu0 %125
  %v127 = vadd.f32 %v126, 1.0
  %v128 = vadd.f32 %v93, 4.0
  %vm129 = vcmp.eq.f32.partialorder %v85, %v128
  %v130 = vsel %vm129, %v119, 0.0
  %v131 = vsel %vm123, %v130, 0.0
  %132 = vadd.xlane.f32.xlu0 %v131
  %v133 = vpop.xlane.xlu0 %132
  %v134 = vld [vmem:[%s3] sm:$0xff]
  %v135 = vld [vmem:[%s3 + $0x8] sm:$0xff]
  %v136 = vmul.f32 %v134, %v127
  %v137 = vmul.f32 %v135, %v127
  %v138 = vadd.f32 %v136, %v133
  %v139 = vadd.f32 %v137, %v133
  %140 = vst [vmem:[%s4] sm:$0xff] %v138
  %141 = vst [vmem:[%s4 + $0x8] sm:$0xff] %v139
  // Predicated region
  $region18: #{film_block.1} parent=0 // pred_check
    _
  $region19: #{film_block.1} parent=0 // pred_check_branch
    %143 = sbr.rel (0) target = $region21
  $region20: #{film_block.1} parent=0 // pred_region
    _
  $region21: #{film_block.1} parent=0 // pred_fallthru
    _
  // Predicated region
  $region22: #{film_block.1} parent=0 // pred_check
    _
  $region23: #{film_block.1} parent=0 // pred_check_branch
    %145 = sbr.rel (0) target = $region25
  $region24: #{film_block.1} parent=0 // pred_region
    _
  $region25: #{film_block.1} parent=0 // pred_fallthru
    _

</llo_original>
